<compile_context>
chip_gen: v5e
topology: v5e:2x2
jax: 0.10.0
libtpu: 0.0.40
codegen_flags: <defaults>
</compile_context>

<pallas_src>
import jax
import jax.numpy as jnp
from jax import lax
from jax.experimental import pallas as pl
from jax.experimental.pallas import tpu as pltpu


def _round_up(x, m):
    return (x + m - 1) // m * m


def _gemm_bias_relu_kernel(x_ref, w_ref, b_ref, o_ref):
    """Fused (TM, K) @ (K, TN) GEMM tile + bias + ReLU epilogue.

    K already contains the 9 conv taps folded in (K = 9*Cin), so there is no
    reduction grid axis, no accumulator scratch and no per-tap RMW: a single
    MXU pass per output tile with f32 accumulation, f32 epilogue, and a cast
    to the output dtype only at the final (lane-dense) store.
    """
    acc = jnp.dot(x_ref[...], w_ref[...], preferred_element_type=jnp.float32)
    o_ref[...] = jnp.maximum(acc + b_ref[...], 0.0).astype(o_ref.dtype)


def conv_bn_relu(x_nhwc, w_oihw, bn_scale, bn_bias, *,
                 compute_dtype=jnp.bfloat16, out_dtype=jnp.bfloat16):
    """One backbone stage: conv3x3 stride 2 pad 1 + folded BatchNorm + ReLU (NHWC)."""
    N, H, W, Cin = x_nhwc.shape
    Cout, Cin_w, KH, KW = w_oihw.shape
    assert (KH, KW) == (3, 3) and Cin_w == Cin
    stride, pad = 2, 1
    OH = (H + 2 * pad - KH) // stride + 1
    OW = (W + 2 * pad - KW) // stride + 1

    # ---- K-folded LHS: 9 shifted stride-2 views of the padded input, concatenated
    # along channels.  out[n,oh,ow,:] needs xp[n, 2*oh+i, 2*ow+j, :] for i,j in 0..2.
    # For Cin <= 32 this costs ~2.25x of a small input and turns each output tile
    # into ONE matmul with K = 9*Cin instead of nine K=Cin matmuls.
    # TODO(synk): for large Cin, build the K-folded tile in-kernel via strided DMAs
    # of parity slabs instead of materializing the folded LHS in HBM.
    xp = jnp.pad(x_nhwc, ((0, 0), (pad, pad), (pad, pad), (0, 0)))
    taps = [xp[:, i::stride, j::stride, :][:, :OH, :OW, :]
            for i in range(KH) for j in range(KW)]
    K = KH * KW * Cin
    lhs = jnp.concatenate(taps, axis=-1).reshape(N * OH * OW, K)

    # ---- fold BN into weights, reshape to (K, Cout) tap-major (matches LHS concat
    # order), pad Cout to a lane-dense multiple of 128 ----
    LANE = 128
    Cout_p = _round_up(Cout, LANE)
    w_fused = w_oihw * bn_scale[:, None, None, None]                # (Cout, Cin, 3, 3)
    w_mat = jnp.transpose(w_fused, (2, 3, 1, 0)).reshape(K, Cout)   # (9*Cin, Cout)
    w_mat = jnp.pad(w_mat, ((0, 0), (0, Cout_p - Cout))).astype(compute_dtype)
    bias = jnp.pad(bn_bias, (0, Cout_p - Cout)).reshape(1, Cout_p).astype(jnp.float32)

    # ---- M tiling: batch folded into the GEMM M dimension ----
    M = N * OH * OW
    TM = 512
    if M <= TM:
        TM = _round_up(M, 16)          # multiple of 16: bf16 sublane-pack friendly
    M_p = _round_up(M, TM)
    lhs = jnp.pad(lhs, ((0, M_p - M), (0, 0))).astype(compute_dtype)

    # ---- Cout tiling: keep the full (padded) Cout in one block while it fits VMEM
    # comfortably, so the LHS is streamed from HBM exactly once; only tile very
    # wide layers.
    TN = Cout_p if Cout_p <= 512 else 256

    grid = (M_p // TM, Cout_p // TN)
    out_itemsize = jnp.dtype(out_dtype).itemsize

    flops = 2 * M_p * K * Cout_p
    bytes_accessed = (lhs.nbytes * grid[1]        # LHS re-read per cout tile
                      + w_mat.nbytes * grid[0]    # weights re-read per M tile
                      + bias.nbytes * grid[0]
                      + M_p * Cout_p * out_itemsize)
    # Double-buffered in/out tiles + headroom; keep under v7x's 64 MiB per-TC VMEM.
    vmem_need = 2 * (TM * K * 2 + K * TN * 2 + TN * 4 + TM * TN * out_itemsize)
    vmem_limit = int(min(max(4 * 1024 * 1024, 2 * vmem_need), 64 * 1024 * 1024))

    out_full = pl.pallas_call(
        _gemm_bias_relu_kernel,
        out_shape=jax.ShapeDtypeStruct((M_p, Cout_p), out_dtype),
        grid_spec=pltpu.PrefetchScalarGridSpec(
            num_scalar_prefetch=0,
            grid=grid,
            in_specs=[
                pl.BlockSpec((TM, K), lambda m, n: (m, 0)),   # K untiled (<= 288)
                pl.BlockSpec((K, TN), lambda m, n: (0, n)),
                pl.BlockSpec((1, TN), lambda m, n: (0, n)),
            ],
            out_specs=pl.BlockSpec((TM, TN), lambda m, n: (m, n)),
        ),
        compiler_params=pltpu.CompilerParams(
            dimension_semantics=("parallel", "parallel"),
            vmem_limit_bytes=vmem_limit,
        ),
        cost_estimate=pl.CostEstimate(
            flops=flops, transcendentals=0, bytes_accessed=bytes_accessed),
    )(lhs, w_mat, bias)

    # Drop the M padding and the Cout lane padding, restore NHWC.
    return out_full[:M, :Cout].reshape(N, OH, OW, Cout)


def init_backbone_params(key, in_ch=4, chs=(16, 32), k=3):
    """Deterministic synthetic parameters for the truncated timm backbone."""
    params = []
    cin = in_ch
    for cout in chs:
        key, kw, ks, kb = jax.random.split(key, 4)
        w = jax.random.normal(kw, (cout, cin, k, k), jnp.float32) * (1.0 / (k * k * cin)) ** 0.5
        # folded BN: scale = gamma / sqrt(var + eps), bias = beta - mean * scale
        scale = 1.0 + 0.1 * jax.random.normal(ks, (cout,), jnp.float32)
        bias = 0.1 * jax.random.normal(kb, (cout,), jnp.float32)
        params.append((w, scale, bias))
        cin = cout
    return params


def timm_backbone_forward(x_nchw, params):
    """Equivalent of TIMMBackbone.forward: run the backbone up to (excluding)
    SelectAdaptivePool2d and return the feature map (NCHW, like PyTorch)."""
    x = jnp.transpose(x_nchw, (0, 2, 3, 1))       # NCHW -> NHWC once
    for idx, (w, scale, bias) in enumerate(params):
        last = idx == len(params) - 1
        # Intermediate stages store bf16 (halves the dominant padded-Cout HBM
        # writeback; the next stage computes in bf16 anyway).  Final stage f32.
        x = conv_bn_relu(x, w, scale, bias,
                         out_dtype=jnp.float32 if last else jnp.bfloat16)
    return jnp.transpose(x, (0, 3, 1, 2))         # back to NCHW once at the end
    # TODO(synk): fuse consecutive stages into one pallas_call (halo-tiled manual
    # DMA of stage-1 tiles) to also remove the inter-stage HBM round-trip.


def _reference_forward(x_nchw, params):
    """Pure-JAX reference (f32) for correctness checking."""
    x = jnp.transpose(x_nchw, (0, 2, 3, 1)).astype(jnp.float32)
    for (w, scale, bias) in params:
        w_hwio = jnp.transpose(w * scale[:, None, None, None], (2, 3, 1, 0))
        x = lax.conv_general_dilated(
            x, w_hwio, window_strides=(2, 2), padding=((1, 1), (1, 1)),
            dimension_numbers=("NHWC", "HWIO", "NHWC"))
        x = jnp.maximum(x + bias, 0.0)
    return jnp.transpose(x, (0, 3, 1, 2))


if __name__ == "__main__":
    key = jax.random.PRNGKey(0)
    key, kx = jax.random.split(key)
    x = jax.random.normal(kx, (2, 4, 16, 16), jnp.float32)   # NCHW like PyTorch

    params = init_backbone_params(key, in_ch=4, chs=(16, 32), k=3)

    fwd = jax.jit(lambda a: timm_backbone_forward(a, params))
    out = jax.block_until_ready(fwd(x))

    assert out.shape == (2, 32, 4, 4), out.shape
    assert out.dtype == jnp.float32
    assert bool(jnp.all(out >= 0.0))                         # ReLU output

    ref = jax.block_until_ready(_reference_forward(x, params))
    err = float(jnp.max(jnp.abs(out - ref)))
    assert jnp.allclose(out, ref, rtol=5e-2, atol=5e-2), err  # bf16-compute tolerance

    print("KERNEL_OK")
</pallas_src>

<mosaic_0001>
module attributes {stable_mosaic.version = 11 : i64} {
  func.func @_gemm_bias_relu_kernel(%arg0: i32, %arg1: i32, %arg2: memref<128x36xbf16, #tpu.memory_space<vmem>>, %arg3: memref<36x128xbf16, #tpu.memory_space<vmem>>, %arg4: memref<1x128xf32, #tpu.memory_space<vmem>>, %arg5: memref<128x128xbf16, #tpu.memory_space<vmem>>) attributes {dimension_semantics = [#tpu.dimension_semantics<parallel>, #tpu.dimension_semantics<parallel>], iteration_bounds = array<i64: 1, 1>, scalar_prefetch = 0 : i64, scratch_operands = 0 : i64, tpu.core_type = #tpu.core_type<tc>, window_params = [{transform_indices = @transform_0, window_bounds = array<i64: 128, 36>}, {transform_indices = @transform_1, window_bounds = array<i64: 36, 128>}, {transform_indices = @transform_2, window_bounds = array<i64: 1, 128>}, {transform_indices = @transform_3, window_bounds = array<i64: 128, 128>}]} {
    %c0 = arith.constant 0 : index
    %c0_0 = arith.constant 0 : index
    %0 = vector.load %arg2[%c0, %c0_0] : memref<128x36xbf16, #tpu.memory_space<vmem>>, vector<128x36xbf16>
    %c0_1 = arith.constant 0 : index
    %c0_2 = arith.constant 0 : index
    %1 = vector.load %arg3[%c0_1, %c0_2] : memref<36x128xbf16, #tpu.memory_space<vmem>>, vector<36x128xbf16>
    %cst = arith.constant dense<0.000000e+00> : vector<128x128xf32>
    %2 = tpu.matmul %0, %1, %cst {dimension_numbers = #tpu.dot_dimension_numbers<[1], [0], [0], [1], [0, 0, 1, 1], [], []>} : vector<128x36xbf16>, vector<36x128xbf16>, vector<128x128xf32> -> vector<128x128xf32>
    %c0_3 = arith.constant 0 : index
    %c0_4 = arith.constant 0 : index
    %3 = vector.load %arg4[%c0_3, %c0_4] : memref<1x128xf32, #tpu.memory_space<vmem>>, vector<1x128xf32>
    %4 = vector.broadcast %3 : vector<1x128xf32> to vector<128x128xf32>
    %5 = arith.addf %2, %4 : vector<128x128xf32>
    %cst_5 = arith.constant 0.000000e+00 : f32
    %6 = vector.broadcast %cst_5 : f32 to vector<128x128xf32>
    %7 = arith.maximumf %5, %6 : vector<128x128xf32>
    %8 = arith.truncf %7 : vector<128x128xf32> to vector<128x128xbf16>
    %c0_6 = arith.constant 0 : index
    %c0_7 = arith.constant 0 : index
    %9 = vector.load %arg5[%c0_6, %c0_7] : memref<128x128xbf16, #tpu.memory_space<vmem>>, vector<128x128xbf16>
    tpu.vector_store %arg5[%c0_6, %c0_7], %8 {strides = array<i32>} : memref<128x128xbf16, #tpu.memory_space<vmem>>, vector<128x128xbf16>,
    return
  }
  func.func @transform_0(%arg0: i32, %arg1: i32) -> (i32, i32) {
    %c0_i32 = arith.constant 0 : i32
    %c0_i32_0 = arith.constant 0 : i32
    return %arg0, %c0_i32 : i32, i32
  }
  func.func @transform_1(%arg0: i32, %arg1: i32) -> (i32, i32) {
    %c0_i32 = arith.constant 0 : i32
    %c0_i32_0 = arith.constant 0 : i32
    return %c0_i32, %arg1 : i32, i32
  }
  func.func @transform_2(%arg0: i32, %arg1: i32) -> (i32, i32) {
    %c0_i32 = arith.constant 0 : i32
    %c0_i32_0 = arith.constant 0 : i32
    return %c0_i32, %arg1 : i32, i32
  }
  func.func @transform_3(%arg0: i32, %arg1: i32) -> (i32, i32) {
    %c0_i32 = arith.constant 0 : i32
    return %arg0, %arg1 : i32, i32
  }
}

module attributes {stable_mosaic.version = 11 : i64} {
  func.func @_gemm_bias_relu_kernel(%arg0: i32, %arg1: i32, %arg2: memref<32x144xbf16, #tpu.memory_space<vmem>>, %arg3: memref<144x128xbf16, #tpu.memory_space<vmem>>, %arg4: memref<1x128xf32, #tpu.memory_space<vmem>>, %arg5: memref<32x128xf32, #tpu.memory_space<vmem>>) attributes {dimension_semantics = [#tpu.dimension_semantics<parallel>, #tpu.dimension_semantics<parallel>], iteration_bounds = array<i64: 1, 1>, scalar_prefetch = 0 : i64, scratch_operands = 0 : i64, tpu.core_type = #tpu.core_type<tc>, window_params = [{transform_indices = @transform_0, window_bounds = array<i64: 32, 144>}, {transform_indices = @transform_1, window_bounds = array<i64: 144, 128>}, {transform_indices = @transform_2, window_bounds = array<i64: 1, 128>}, {transform_indices = @transform_3, window_bounds = array<i64: 32, 128>}]} {
    %c0 = arith.constant 0 : index
    %c0_0 = arith.constant 0 : index
    %0 = vector.load %arg2[%c0, %c0_0] : memref<32x144xbf16, #tpu.memory_space<vmem>>, vector<32x144xbf16>
    %c0_1 = arith.constant 0 : index
    %c0_2 = arith.constant 0 : index
    %1 = vector.load %arg3[%c0_1, %c0_2] : memref<144x128xbf16, #tpu.memory_space<vmem>>, vector<144x128xbf16>
    %cst = arith.constant dense<0.000000e+00> : vector<32x128xf32>
    %2 = tpu.matmul %0, %1, %cst {dimension_numbers = #tpu.dot_dimension_numbers<[1], [0], [0], [1], [0, 0, 1, 1], [], []>} : vector<32x144xbf16>, vector<144x128xbf16>, vector<32x128xf32> -> vector<32x128xf32>
    %c0_3 = arith.constant 0 : index
    %c0_4 = arith.constant 0 : index
    %3 = vector.load %arg4[%c0_3, %c0_4] : memref<1x128xf32, #tpu.memory_space<vmem>>, vector<1x128xf32>
    %4 = vector.broadcast %3 : vector<1x128xf32> to vector<32x128xf32>
    %5 = arith.addf %2, %4 : vector<32x128xf32>
    %cst_5 = arith.constant 0.000000e+00 : f32
    %6 = vector.broadcast %cst_5 : f32 to vector<32x128xf32>
    %7 = arith.maximumf %5, %6 : vector<32x128xf32>
    %c0_6 = arith.constant 0 : index
    %c0_7 = arith.constant 0 : index
    %8 = vector.load %arg5[%c0_6, %c0_7] : memref<32x128xf32, #tpu.memory_space<vmem>>, vector<32x128xf32>
    tpu.vector_store %arg5[%c0_6, %c0_7], %7 {strides = array<i32>} : memref<32x128xf32, #tpu.memory_space<vmem>>, vector<32x128xf32>,
    return
  }
  func.func @transform_0(%arg0: i32, %arg1: i32) -> (i32, i32) {
    %c0_i32 = arith.constant 0 : i32
    %c0_i32_0 = arith.constant 0 : i32
    return %arg0, %c0_i32 : i32, i32
  }
  func.func @transform_1(%arg0: i32, %arg1: i32) -> (i32, i32) {
    %c0_i32 = arith.constant 0 : i32
    %c0_i32_0 = arith.constant 0 : i32
    return %c0_i32, %arg1 : i32, i32
  }
  func.func @transform_2(%arg0: i32, %arg1: i32) -> (i32, i32) {
    %c0_i32 = arith.constant 0 : i32
    %c0_i32_0 = arith.constant 0 : i32
    return %c0_i32, %arg1 : i32, i32
  }
  func.func @transform_3(%arg0: i32, %arg1: i32) -> (i32, i32) {
    %c0_i32 = arith.constant 0 : i32
    return %arg0, %arg1 : i32, i32
  }
}

</mosaic_0001>

<llo_original>
// kernel: _lambda_.2
$region0: #{_lambda_.2}
  #allocation0 [shape = 'u32[]', space=smem, size = 0x4, offset = 0x4, fixed_abs, tag = 'smem constant byte address 0x4 - core index']
  #allocation1 [shape = 'u32[72,128]{1,0:T(1,128)}', space=vmem, size = 0x9000, scoped, tag = 'internal scratch']
  %s0 = inlined_call_operand.vmem [shape: bf16[128,36], index: 0, kind: input, shape index: {}]
  %s1 = inlined_call_operand.vmem [shape: bf16[36,128], index: 1, kind: input, shape index: {}]
  %s2 = inlined_call_operand.vmem [shape: f32[1,128], index: 2, kind: input, shape index: {}]
  %s3 = inlined_call_operand.vmem [shape: bf16[128,128], index: 3, kind: output, shape index: {}]
  %s4 = sld [smem:[#allocation0]]
  $region22: #{_lambda_.2} parent=0
    _
  %s6 = ssub.s32 1, %s4
  %s7 = scalar_select 0, %s6, %s4
  // Predicated region
  $region2: #{_lambda_.2} parent=0 // pred_check
    _
  $region3: #{_lambda_.2} parent=0 // pred_check_branch
    %9 = sbr.rel (0) target = $region5
  $region4: #{_lambda_.2} parent=0 // pred_region
    _
  $region5: #{_lambda_.2} parent=0 // pred_fallthru
    _
  // Predicated region
  $region6: #{_lambda_.2} parent=0 // pred_check
    _
  $region7: #{_lambda_.2} parent=0 // pred_check_branch
    %11 = sbr.rel (0) target = $region9
  $region8: #{_lambda_.2} parent=0 // pred_region
    _
  $region9: #{_lambda_.2} parent=0 // pred_fallthru
    _
  // Predicated region
  $region10: #{_lambda_.2} parent=0 // pred_check
    _
  $region11: #{_lambda_.2} parent=0 // pred_check_branch
    %13 = sbr.rel (0) target = $region13
  $region12: #{_lambda_.2} parent=0 // pred_region
    _
  $region13: #{_lambda_.2} parent=0 // pred_fallthru
    _
  %v15 = vld [vmem:[%s0] sm:$0xf]
  %v16 = vld [vmem:[%s0 + $0x4] sm:$0xf]
  %v17 = vld [vmem:[%s0 + $0x8] sm:$0xf]
  %v18 = vld [vmem:[%s0 + $0xc] sm:$0xf]
  %v19 = vld [vmem:[%s0 + $0x10] sm:$0xf]
  %v20 = vld [vmem:[%s0 + $0x14] sm:$0xf]
  %v21 = vld [vmem:[%s0 + $0x18] sm:$0xf]
  %v22 = vld [vmem:[%s0 + $0x1c] sm:$0xf]
  %v23 = vld [vmem:[%s0 + $0x20] sm:$0xf]
  %v24 = vld [vmem:[%s0 + $0x24] sm:$0xf]
  %v25 = vld [vmem:[%s0 + $0x28] sm:$0xf]
  %v26 = vld [vmem:[%s0 + $0x2c] sm:$0xf]
  %v27 = vld [vmem:[%s0 + $0x30] sm:$0xf]
  %v28 = vld [vmem:[%s0 + $0x34] sm:$0xf]
  %v29 = vld [vmem:[%s0 + $0x38] sm:$0xf]
  %v30 = vld [vmem:[%s0 + $0x3c] sm:$0xf]
  %v31 = vld [vmem:[%s1] sm:$0xf]
  %v32 = vld [vmem:[%s1 + $0x4] sm:$0xf]
  %v33 = vld [vmem:[%s1 + $0x8] sm:$0xf]
  %v34 = vld [vmem:[%s1 + $0xc] sm:$0xf]
  %v35 = vld [vmem:[%s1 + $0x10] sm:$0x3]
  %v36 = vld [vmem:[%s2] sm:$0x1]
  %v38 = vperm.slane %v36, 0
  %v56 = vunpack.c.l.b16 %v15
  %v57 = vunpack.c.l.b16 %v16
  %v58 = vunpack.c.l.b16 %v17
  %v59 = vunpack.c.l.b16 %v18
  %v60 = vunpack.c.l.b16 %v19
  %v61 = vunpack.c.l.b16 %v20
  %v62 = vunpack.c.l.b16 %v21
  %v63 = vunpack.c.l.b16 %v22
  %v64 = vunpack.c.l.b16 %v23
  %v65 = vunpack.c.l.b16 %v24
  %v66 = vunpack.c.l.b16 %v25
  %v67 = vunpack.c.l.b16 %v26
  %v68 = vunpack.c.l.b16 %v27
  %v69 = vunpack.c.l.b16 %v28
  %v70 = vunpack.c.l.b16 %v29
  %v71 = vunpack.c.l.b16 %v30
  %v72 = vpack.c.b16 %v57, %v56
  %v73 = vpack.c.b16 %v59, %v58
  %v74 = vpack.c.b16 %v61, %v60
  %v75 = vpack.c.b16 %v63, %v62
  %v76 = vpack.c.b16 %v65, %v64
  %v77 = vpack.c.b16 %v67, %v66
  %v78 = vpack.c.b16 %v69, %v68
  %v79 = vpack.c.b16 %v71, %v70
  %v85 = vunpack.c.l.b16 %v31
  %v86 = vunpack.c.l.b16 %v32
  %v87 = vunpack.c.l.b16 %v33
  %v88 = vunpack.c.l.b16 %v34
  %v89 = vunpack.c.l.b16 %v35
  %v90 = vpack.c.b16 %v86, %v85
  %v91 = vpack.c.b16 %v88, %v87
  %v92 = vpack.c.b16 %v89, %v89
  %vm95 = vcmask 293888
  %v97 = vsel %vm95, %v72, 0
  %v100 = vsel %vm95, %v73, 0
  %v103 = vsel %vm95, %v74, 0
  %v106 = vsel %vm95, %v75, 0
  %v109 = vsel %vm95, %v76, 0
  %v112 = vsel %vm95, %v77, 0
  %v115 = vsel %vm95, %v78, 0
  %v118 = vsel %vm95, %v79, 0
  %vm120 = vcmask 1041408
  %v122 = vsel %vm120, %v92, 0
  %124 = vmatpush.bf16.msra.mxu0 0
  %125 = vmatpush.bf16.msra.mxu0 0
  %126 = vmatpush.bf16.msra.mxu0 0
  %127 = vmatpush.bf16.msra.mxu0 0
  %128 = vmatpush.bf16.msra.mxu0 0
  %129 = vmatpush.bf16.msra.mxu0 %v122
  %130 = vmatpush.bf16.msra.mxu0 %v91
  %131 = vmatpush.bf16.msra.mxu0 %v90
  %132 = vmatmul.bf16.gmra.mxu0 %v97
  %v133 = vpop.f32.mrf.mxu0
  %v134 = vadd.f32 %v38, %v133
  %v135 = vpop.f32.mrf.mxu0
  %v136 = vadd.f32 %v38, %v135
  %137 = vmatmul.bf16.gmra.mxu0 %v100
  %v138 = vpop.f32.mrf.mxu0
  %v139 = vadd.f32 %v38, %v138
  %v140 = vpop.f32.mrf.mxu0
  %v141 = vadd.f32 %v38, %v140
  %142 = vmatmul.bf16.gmra.mxu0 %v103
  %v143 = vpop.f32.mrf.mxu0
  %v144 = vadd.f32 %v38, %v143
  %v145 = vpop.f32.mrf.mxu0
  %v146 = vadd.f32 %v38, %v145
  %147 = vmatmul.bf16.gmra.mxu0 %v106
  %v148 = vpop.f32.mrf.mxu0
  %v149 = vadd.f32 %v38, %v148
  %v150 = vpop.f32.mrf.mxu0
  %v151 = vadd.f32 %v38, %v150
  %152 = vmatmul.bf16.gmra.mxu0 %v109
  %v153 = vpop.f32.mrf.mxu0
  %v154 = vadd.f32 %v38, %v153
  %v155 = vpop.f32.mrf.mxu0
  %v156 = vadd.f32 %v38, %v155
  %157 = vmatmul.bf16.gmra.mxu0 %v112
  %v158 = vpop.f32.mrf.mxu0
  %v159 = vadd.f32 %v38, %v158
  %v160 = vpop.f32.mrf.mxu0
  %v161 = vadd.f32 %v38, %v160
  %162 = vmatmul.bf16.gmra.mxu0 %v115
  %v163 = vpop.f32.mrf.mxu0
  %v164 = vadd.f32 %v38, %v163
  %v165 = vpop.f32.mrf.mxu0
  %v166 = vadd.f32 %v38, %v165
  %167 = vmatmul.bf16.gmra.mxu0 %v118
  %v168 = vpop.f32.mrf.mxu0
  %v169 = vadd.f32 %v38, %v168
  %v170 = vpop.f32.mrf.mxu0
  %v171 = vadd.f32 %v38, %v170
  %172 = vdwg.mxu0
  %v173 = vmax.f32 %v134, 0.0
  %v174 = vmax.f32 %v136, 0.0
  %v175 = vmax.f32 %v139, 0.0
  %v176 = vmax.f32 %v141, 0.0
  %v177 = vmax.f32 %v144, 0.0
  %v178 = vmax.f32 %v146, 0.0
  %v179 = vmax.f32 %v149, 0.0
  %v180 = vmax.f32 %v151, 0.0
  %v181 = vmax.f32 %v154, 0.0
  %v182 = vmax.f32 %v156, 0.0
  %v183 = vmax.f32 %v159, 0.0
  %v184 = vmax.f32 %v161, 0.0
  %v185 = vmax.f32 %v164, 0.0
  %v186 = vmax.f32 %v166, 0.0
  %v187 = vmax.f32 %v169, 0.0
  %v188 = vmax.f32 %v171, 0.0
  %v189 = vpack.c.bf16 %v173, %v173
  %v190 = vpack.c.bf16 %v174, %v174
  %v191 = vpack.c.bf16 %v175, %v175
  %v192 = vpack.c.bf16 %v176, %v176
  %v193 = vpack.c.bf16 %v177, %v177
  %v194 = vpack.c.bf16 %v178, %v178
  %v195 = vpack.c.bf16 %v179, %v179
  %v196 = vpack.c.bf16 %v180, %v180
  %v197 = vpack.c.bf16 %v181, %v181
  %v198 = vpack.c.bf16 %v182, %v182
  %v199 = vpack.c.bf16 %v183, %v183
  %v200 = vpack.c.bf16 %v184, %v184
  %v201 = vpack.c.bf16 %v185, %v185
  %v202 = vpack.c.bf16 %v186, %v186
  %v203 = vpack.c.bf16 %v187, %v187
  %v204 = vpack.c.bf16 %v188, %v188
  %205 = vst [vmem:[%s3] sm:$0xf] %v189
  %206 = vst [vmem:[%s3 + $0x4] sm:$0xf] %v190
  %207 = vst [vmem:[%s3 + $0x8] sm:$0xf] %v191
  %208 = vst [vmem:[%s3 + $0xc] sm:$0xf] %v192
  %209 = vst [vmem:[%s3 + $0x10] sm:$0xf] %v193
  %210 = vst [vmem:[%s3 + $0x14] sm:$0xf] %v194
  %211 = vst [vmem:[%s3 + $0x18] sm:$0xf] %v195
  %212 = vst [vmem:[%s3 + $0x1c] sm:$0xf] %v196
  %213 = vst [vmem:[%s3 + $0x20] sm:$0xf] %v197
  %214 = vst [vmem:[%s3 + $0x24] sm:$0xf] %v198
  %215 = vst [vmem:[%s3 + $0x28] sm:$0xf] %v199
  %216 = vst [vmem:[%s3 + $0x2c] sm:$0xf] %v200
  %217 = vst [vmem:[%s3 + $0x30] sm:$0xf] %v201
  %218 = vst [vmem:[%s3 + $0x34] sm:$0xf] %v202
  %219 = vst [vmem:[%s3 + $0x38] sm:$0xf] %v203
  %220 = vst [vmem:[%s3 + $0x3c] sm:$0xf] %v204
  // Predicated region
  $region14: #{_lambda_.2} parent=0 // pred_check
    _
  $region15: #{_lambda_.2} parent=0 // pred_check_branch
    %222 = sbr.rel (0) target = $region17
  $region16: #{_lambda_.2} parent=0 // pred_region
    _
  $region17: #{_lambda_.2} parent=0 // pred_fallthru
    _
  // Predicated region
  $region18: #{_lambda_.2} parent=0 // pred_check
    _
  $region19: #{_lambda_.2} parent=0 // pred_check_branch
    %224 = sbr.rel (0) target = $region21
  $region20: #{_lambda_.2} parent=0 // pred_region
    _
  $region21: #{_lambda_.2} parent=0 // pred_fallthru
    _

// kernel: _lambda_.3
$region0: #{_lambda_.3}
  #allocation0 [shape = 'u32[]', space=smem, size = 0x4, offset = 0x4, fixed_abs, tag = 'smem constant byte address 0x4 - core index']
  #allocation1 [shape = 'u32[72,128]{1,0:T(1,128)}', space=vmem, size = 0x9000, scoped, tag = 'internal scratch']
  %s0 = inlined_call_operand.vmem [shape: bf16[32,144], index: 0, kind: input, shape index: {}]
  %s1 = inlined_call_operand.vmem [shape: bf16[144,128], index: 1, kind: input, shape index: {}]
  %s2 = inlined_call_operand.vmem [shape: f32[1,128], index: 2, kind: input, shape index: {}]
  %s3 = inlined_call_operand.hbm [shape: f32[32,128], index: 3, kind: output, shape index: {}]
  %s4 = sld [smem:[#allocation0]]
  $region22: #{_lambda_.3} parent=0
    _
  %s6 = ssub.s32 1, %s4
  %s7 = scalar_select 0, %s6, %s4
  $region1: #{_lambda_.3} parent=0
    #allocation2 [shape = 'u8[16384]{0}', space=vmem, size = 0x4000, scoped, tag = 'output window, operand 0, single buffered']
    #allocation3 [shape = 's32[1]{0}', space=sflag, size = 0x4, scoped, tag = 'scoped memory for _lambda_.3']
    %8 = vsyncpa [#allocation3], 0
    // Predicated region
    $region2: #{_lambda_.3} parent=1 // pred_check
      _
    $region3: #{_lambda_.3} parent=1 // pred_check_branch
      %10 = sbr.rel (0) target = $region5
    $region4: #{_lambda_.3} parent=1 // pred_region
      _
    $region5: #{_lambda_.3} parent=1 // pred_fallthru
      _
    // Predicated region
    $region6: #{_lambda_.3} parent=1 // pred_check
      _
    $region7: #{_lambda_.3} parent=1 // pred_check_branch
      %12 = sbr.rel (0) target = $region9
    $region8: #{_lambda_.3} parent=1 // pred_region
      _
    $region9: #{_lambda_.3} parent=1 // pred_fallthru
      _
    // Predicated region
    $region10: #{_lambda_.3} parent=1 // pred_check
      _
    $region11: #{_lambda_.3} parent=1 // pred_check_branch
      %14 = sbr.rel (0) target = $region13
    $region12: #{_lambda_.3} parent=1 // pred_region
      _
    $region13: #{_lambda_.3} parent=1 // pred_fallthru
      _
    %v16 = vld [vmem:[%s0] sm:$0xff]
    %v17 = vld [vmem:[%s0 + $0x8] sm:$0xff]
    %v18 = vld [vmem:[%s0 + $0x10] sm:$0xff]
    %v19 = vld [vmem:[%s0 + $0x18] sm:$0xff]
    %v20 = vld [vmem:[%s1] sm:$0xf]
    %v21 = vld [vmem:[%s1 + $0x4] sm:$0xf]
    %v22 = vld [vmem:[%s1 + $0x8] sm:$0xf]
    %v23 = vld [vmem:[%s1 + $0xc] sm:$0xf]
    %v24 = vld [vmem:[%s1 + $0x10] sm:$0xf]
    %v25 = vld [vmem:[%s1 + $0x14] sm:$0xf]
    %v26 = vld [vmem:[%s1 + $0x18] sm:$0xf]
    %v27 = vld [vmem:[%s1 + $0x1c] sm:$0xf]
    %v28 = vld [vmem:[%s1 + $0x20] sm:$0xf]
    %v29 = vld [vmem:[%s1 + $0x24] sm:$0xf]
    %v30 = vld [vmem:[%s1 + $0x28] sm:$0xf]
    %v31 = vld [vmem:[%s1 + $0x2c] sm:$0xf]
    %v32 = vld [vmem:[%s1 + $0x30] sm:$0xf]
    %v33 = vld [vmem:[%s1 + $0x34] sm:$0xf]
    %v34 = vld [vmem:[%s1 + $0x38] sm:$0xf]
    %v35 = vld [vmem:[%s1 + $0x3c] sm:$0xf]
    %v36 = vld [vmem:[%s1 + $0x40] sm:$0xf]
    %v37 = vld [vmem:[%s1 + $0x44] sm:$0xf]
    %v38 = vld [vmem:[%s2] sm:$0x1]
    %v40 = vperm.slane %v38, 0
    %v46 = vunpack.c.l.b16 %v16
    %v47 = vunpack.c.h.b16 %v16
    %v48 = vunpack.c.l.b16 %v17
    %v49 = vunpack.c.h.b16 %v17
    %v50 = vunpack.c.l.b16 %v18
    %v51 = vunpack.c.h.b16 %v18
    %v52 = vunpack.c.l.b16 %v19
    %v53 = vunpack.c.h.b16 %v19
    %v54 = vpack.c.b16 %v48, %v46
    %v55 = vpack.c.b16 %v49, %v47
    %v56 = vpack.c.b16 %v52, %v50
    %v57 = vpack.c.b16 %v53, %v51
    %v78 = vunpack.c.l.b16 %v20
    %v79 = vunpack.c.l.b16 %v21
    %v80 = vunpack.c.l.b16 %v22
    %v81 = vunpack.c.l.b16 %v23
    %v82 = vunpack.c.l.b16 %v24
    %v83 = vunpack.c.l.b16 %v25
    %v84 = vunpack.c.l.b16 %v26
    %v85 = vunpack.c.l.b16 %v27
    %v86 = vunpack.c.l.b16 %v28
    %v87 = vunpack.c.l.b16 %v29
    %v88 = vunpack.c.l.b16 %v30
    %v89 = vunpack.c.l.b16 %v31
    %v90 = vunpack.c.l.b16 %v32
    %v91 = vunpack.c.l.b16 %v33
    %v92 = vunpack.c.l.b16 %v34
    %v93 = vunpack.c.l.b16 %v35
    %v94 = vunpack.c.l.b16 %v36
    %v95 = vunpack.c.l.b16 %v37
    %v96 = vpack.c.b16 %v79, %v78
    %v97 = vpack.c.b16 %v81, %v80
    %v98 = vpack.c.b16 %v83, %v82
    %v99 = vpack.c.b16 %v85, %v84
    %v100 = vpack.c.b16 %v87, %v86
    %v101 = vpack.c.b16 %v89, %v88
    %v102 = vpack.c.b16 %v91, %v90
    %v103 = vpack.c.b16 %v93, %v92
    %v104 = vpack.c.b16 %v95, %v94
    %vm114 = vcmask 130048
    %v116 = vsel %vm114, %v55, 0
    %v119 = vsel %vm114, %v57, 0
    %121 = vmatpush.bf16.msra.mxu0 %v103
    %122 = vmatpush.bf16.msra.mxu0 %v102
    %123 = vmatpush.bf16.msra.mxu0 %v101
    %124 = vmatpush.bf16.msra.mxu0 %v100
    %125 = vmatpush.bf16.msra.mxu0 %v99
    %126 = vmatpush.bf16.msra.mxu0 %v98
    %127 = vmatpush.bf16.msra.mxu0 %v97
    %128 = vmatpush.bf16.msra.mxu0 %v96
    %129 = vmatmul.bf16.gmra.mxu0 %v54
    %v130 = vpop.f32.mrf.mxu0
    %v131 = vadd.f32 %v40, %v130
    %v132 = vpop.f32.mrf.mxu0
    %v133 = vadd.f32 %v40, %v132
    %134 = vmatmul.bf16.gmra.mxu0 %v56
    %v135 = vpop.f32.mrf.mxu0
    %v136 = vadd.f32 %v40, %v135
    %v137 = vpop.f32.mrf.mxu0
    %v138 = vadd.f32 %v40, %v137
    %139 = vdwg.mxu0
    %140 = vmatpush.bf16.msra.mxu0 0
    %141 = vmatpush.bf16.msra.mxu0 0
    %142 = vmatpush.bf16.msra.mxu0 0
    %143 = vmatpush.bf16.msra.mxu0 0
    %144 = vmatpush.bf16.msra.mxu0 0
    %145 = vmatpush.bf16.msra.mxu0 0
    %146 = vmatpush.bf16.msra.mxu0 0
    %147 = vmatpush.bf16.msra.mxu0 %v104
    %148 = vmatmul.bf16.gmra.mxu0 %v116
    %v149 = vpop.f32.mrf.mxu0
    %v150 = vadd.f32 %v131, %v149
    %v151 = vpop.f32.mrf.mxu0
    %v152 = vadd.f32 %v133, %v151
    %153 = vmatmul.bf16.gmra.mxu0 %v119
    %v154 = vpop.f32.mrf.mxu0
    %v155 = vadd.f32 %v136, %v154
    %v156 = vpop.f32.mrf.mxu0
    %v157 = vadd.f32 %v138, %v156
    %158 = vdwg.mxu0
    %v159 = vmax.f32 %v150, 0.0
    %v160 = vmax.f32 %v152, 0.0
    %v161 = vmax.f32 %v155, 0.0
    %v162 = vmax.f32 %v157, 0.0
    %163 = vst [vmem:[#allocation2] sm:$0xff] %v159
    %164 = vst [vmem:[#allocation2 + $0x8] sm:$0xff] %v160
    %165 = vst [vmem:[#allocation2 + $0x10] sm:$0xff] %v161
    %166 = vst [vmem:[#allocation2 + $0x18] sm:$0xff] %v162
    // Predicated region
    $region14: #{_lambda_.3} parent=1 // pred_check
      _
    $region15: #{_lambda_.3} parent=1 // pred_check_branch
      %168 = sbr.rel (0) target = $region17
    $region16: #{_lambda_.3} parent=1 // pred_region
      %170 = vsyncadd [#allocation3], 0
      %s171 = sshll.u32 [#allocation2], 4
      %s172 = int_to_ptr.vmem [resolvable:$true] %s171
      %s173 = sshll.u32 %s3, 4
      %s174 = int_to_ptr.hbm [resolvable:$true] %s173
      %179 = dma.vmem_to_hbm [thread:$0]  %s172, 512, %s174, [#allocation3], 128, 128, 8
    $region17: #{_lambda_.3} parent=1 // pred_fallthru
      _
    // Predicated region
    $region18: #{_lambda_.3} parent=1 // pred_check
      _
    $region19: #{_lambda_.3} parent=1 // pred_check_branch
      %181 = sbr.rel (0) target = $region21
    $region20: #{_lambda_.3} parent=1 // pred_region
      %183 = dma.done [#allocation3], 512
    $region21: #{_lambda_.3} parent=1 // pred_fallthru
      _
    %184 = vsyncpa [#allocation3], 1

</llo_original>
